<compile_context>
chip_gen: v5e
topology: v5e:2x2
jax: 0.10.0
libtpu: 0.0.40
codegen_flags: <defaults>
</compile_context>

<pallas_src>
import math

import jax
import jax.numpy as jnp
from jax.experimental import pallas as pl
from jax.experimental.pallas import tpu as pltpu


def _round_up(n, m):
    return ((n + m - 1) // m) * m


def _round_down(n, m):
    return (n // m) * m


def _pos_emb_kernel_natural(x_ref, w_ref, o_ref):
    """Module-layout tile: rows = batch (sublanes), cols = [x | sin | cos] (lanes).

    x_ref: (Bt, 1)      f32
    w_ref: (1, H)       f32
    o_ref: (Bt, 1 + 2H)
    """
    H = w_ref.shape[1]
    x = x_ref[...]                                   # (Bt, 1)
    w = w_ref[...]                                   # (1, H)
    # Same op order as the reference: ((x * w) * 2) * pi, all f32, on the VPU.
    freqs = (x * w) * 2.0 * math.pi                  # (Bt, H) broadcast outer product
    # Direct static-slice stores: no concatenate, no intermediate VMEM copy.
    o_ref[:, 0:1] = x.astype(o_ref.dtype)
    o_ref[:, 1:1 + H] = jnp.sin(freqs).astype(o_ref.dtype)
    o_ref[:, 1 + H:] = jnp.cos(freqs).astype(o_ref.dtype)


def _pos_emb_kernel_transposed(x_ref, w_ref, o_ref):
    """Lane-dense tile for fused consumers: cols = batch (lanes), rows =
    [sin(0:H) | cos(H:2H) | x(2H) | zeros] -- sublane-aligned when H % 8 == 0.

    x_ref: (1, Bt)     f32
    w_ref: (H, 1)      f32
    o_ref: (R_pad, Bt) with R_pad = round_up(2H + 1, 8)
    """
    H = w_ref.shape[0]
    R_pad = o_ref.shape[0]
    x = x_ref[...]                                   # (1, Bt)
    w = w_ref[...]                                   # (H, 1)
    freqs = (w * x) * 2.0 * math.pi                  # (H, Bt)
    o_ref[0:H, :] = jnp.sin(freqs).astype(o_ref.dtype)
    o_ref[H:2 * H, :] = jnp.cos(freqs).astype(o_ref.dtype)
    o_ref[2 * H:2 * H + 1, :] = x.astype(o_ref.dtype)
    if R_pad > 2 * H + 1:                            # static: zero the pad rows
        o_ref[2 * H + 1:, :] = jnp.zeros((R_pad - 2 * H - 1, x.shape[1]), o_ref.dtype)


def random_or_learned_sinusoidal_pos_emb(x, weights, *, out_dtype=None,
                                         return_transposed=False):
    """RandomOrLearnedSinusoidalPosEmb forward.

    x: (B,) timesteps, weights: (half_dim,).

    Default: (B, 2*half_dim + 1) in the module's layout [x | sin | cos],
    emitted directly by the kernel (no pad / slice / transpose HLOs).

    return_transposed=True: lane-dense (2H+1, B) slab for fused consumers with
    row order [sin | cos | x].  Internally the slab is computed with rows
    padded to a multiple of 8 and batch padded to a multiple of 128; the
    return is sliced to exactly (2H+1, B) -- fused consumers must not assume
    padded extents.

    out_dtype: optional narrower store dtype (e.g. bf16 for large B on
    v6e/v7x).  Compute stays f32.  NOTE: this also narrows the raw-x
    passthrough row; keep the f32 default (especially on v5e) if downstream
    needs exact timesteps.
    """
    B = x.shape[0]
    H = weights.shape[0]
    out_dtype = jnp.float32 if out_dtype is None else out_dtype

    x = x.astype(jnp.float32)
    weights = weights.astype(jnp.float32)

    # vreg-pressure bound: ~3 * H * tile live f32 intermediates (freqs, sin,
    # cos) vs. the 64 x 1024-elem vreg file (same on v5e/v6e/v7x).
    vreg_cap = max(8, 16384 // max(H, 1))

    if not return_transposed:
        # ---------- Natural / module layout: (B, 1 + 2H). ----------
        rows = 1 + 2 * H
        if B <= 256:
            # Single full-array block: no (8,128) divisibility constraints, no
            # padding, one grid step.  Right call in the launch-overhead-bound
            # small-B regime on every generation.
            B_tile = B
        else:
            B_tile = min(_round_down(vreg_cap, 8), 4096)
            # v7x megacore: make sure the batch axis yields >= 2 parallel steps.
            B_tile = max(8, min(B_tile, _round_up(pl.cdiv(B, 2), 8)))
        grid = (pl.cdiv(B, B_tile),)
        return pl.pallas_call(
            _pos_emb_kernel_natural,
            out_shape=jax.ShapeDtypeStruct((B, rows), out_dtype),
            grid=grid,
            in_specs=[
                pl.BlockSpec((B_tile, 1), lambda i: (i, 0)),   # timesteps, batch-tiled
                pl.BlockSpec((1, H), lambda i: (0, 0)),        # weights, single block
            ],
            out_specs=pl.BlockSpec((B_tile, rows), lambda i: (i, 0)),
            compiler_params=pltpu.CompilerParams(
                dimension_semantics=("parallel",),
            ),
        )(x.reshape(B, 1), weights.reshape(1, H))

    # ---------- Lane-dense transposed layout for fused consumers. ----------
    R = 2 * H + 1
    R_pad = _round_up(R, 8)                    # sublane-aligned sin/cos slabs
    lane_cap = min(1024, max(128, _round_down(vreg_cap, 128)))
    B_tile = min(lane_cap, _round_up(max(B, 1), 128))
    if B >= 256 and _round_up(B, B_tile) == B_tile:
        # v7x megacore: prefer >= 2 grid steps when there is enough work.
        B_tile = max(128, _round_up(pl.cdiv(B, 2), 128))
    B_pad = _round_up(B, B_tile)
    grid = (B_pad // B_tile,)
    x_lane = (x if B_pad == B else jnp.pad(x, (0, B_pad - B))).reshape(1, B_pad)

    out_t = pl.pallas_call(
        _pos_emb_kernel_transposed,
        out_shape=jax.ShapeDtypeStruct((R_pad, B_pad), out_dtype),
        grid=grid,
        in_specs=[
            pl.BlockSpec((1, B_tile), lambda i: (0, i)),       # timesteps on lanes
            pl.BlockSpec((H, 1), lambda i: (0, 0)),            # weights on sublanes
        ],
        out_specs=pl.BlockSpec((R_pad, B_tile), lambda i: (0, i)),
        compiler_params=pltpu.CompilerParams(
            dimension_semantics=("parallel",),
        ),
    )(x_lane, weights.reshape(H, 1))

    if R_pad != R or B_pad != B:
        out_t = out_t[:R, :B]
    return out_t                               # (2H+1, B), rows [sin | cos | x]


def reference(x, weights):
    x2d = x.reshape(-1, 1)
    freqs = x2d * weights.reshape(1, -1) * 2.0 * math.pi
    return jnp.concatenate([x2d, jnp.sin(freqs), jnp.cos(freqs)], axis=-1)


if __name__ == "__main__":
    key = jax.random.PRNGKey(0)
    k_x, k_w = jax.random.split(key)

    B = 8
    dim = 32                      # learned_sinusoidal_dim, must be even
    half_dim = dim // 2

    # Deterministic parameter init (module does torch.randn(half_dim)).
    weights = jax.random.normal(k_w, (half_dim,), dtype=jnp.float32)
    # Timesteps (module's forward takes a 1-D batch of scalars).
    x = jax.random.uniform(k_x, (B,), dtype=jnp.float32) * 1000.0

    ref = reference(x, weights)

    # Default path: module layout (B, dim+1) = [x | sin | cos], one pallas_call.
    out = jax.block_until_ready(random_or_learned_sinusoidal_pos_emb(x, weights))
    assert out.shape == (B, dim + 1), out.shape
    assert jnp.allclose(out, ref, atol=1e-5, rtol=1e-5), "natural path mismatch"

    # Fused-consumer path: lane-dense transposed slab, rows [sin | cos | x].
    out_t = jax.block_until_ready(
        random_or_learned_sinusoidal_pos_emb(x, weights, return_transposed=True))
    assert out_t.shape == (dim + 1, B), out_t.shape
    ref_t = jnp.concatenate([ref[:, 1:], ref[:, :1]], axis=-1).T
    assert jnp.allclose(out_t, ref_t, atol=1e-5, rtol=1e-5), "transposed path mismatch"

    print("KERNEL_OK")
</pallas_src>

<mosaic_0001>
module attributes {stable_mosaic.version = 11 : i64} {
  func.func @_pos_emb_kernel_natural(%arg0: i32, %arg1: memref<8x1xf32, #tpu.memory_space<vmem>>, %arg2: memref<1x16xf32, #tpu.memory_space<vmem>>, %arg3: memref<8x33xf32, #tpu.memory_space<vmem>>) attributes {dimension_semantics = [#tpu.dimension_semantics<parallel>], iteration_bounds = array<i64: 1>, scalar_prefetch = 0 : i64, scratch_operands = 0 : i64, tpu.core_type = #tpu.core_type<tc>, window_params = [{transform_indices = @transform_0, window_bounds = array<i64: 8, 1>}, {pipeline_mode = #tpu.pipeline_mode<synchronous>, transform_indices = @transform_1, window_bounds = array<i64: 1, 16>}, {transform_indices = @transform_2, window_bounds = array<i64: 8, 33>}]} {
    %c0 = arith.constant 0 : index
    %c0_0 = arith.constant 0 : index
    %0 = vector.load %arg1[%c0, %c0_0] : memref<8x1xf32, #tpu.memory_space<vmem>>, vector<8x1xf32>
    %c0_1 = arith.constant 0 : index
    %c0_2 = arith.constant 0 : index
    %1 = vector.load %arg2[%c0_1, %c0_2] : memref<1x16xf32, #tpu.memory_space<vmem>>, vector<1x16xf32>
    %2 = vector.broadcast %0 : vector<8x1xf32> to vector<8x16xf32>
    %3 = vector.broadcast %1 : vector<1x16xf32> to vector<8x16xf32>
    %4 = arith.mulf %2, %3 : vector<8x16xf32>
    %cst = arith.constant 2.000000e+00 : f32
    %5 = vector.broadcast %cst : f32 to vector<8x16xf32>
    %6 = arith.mulf %4, %5 : vector<8x16xf32>
    %cst_3 = arith.constant 3.14159274 : f32
    %7 = vector.broadcast %cst_3 : f32 to vector<8x16xf32>
    %8 = arith.mulf %6, %7 : vector<8x16xf32>
    %c0_4 = arith.constant 0 : index
    %c0_5 = arith.constant 0 : index
    %9 = vector.load %arg3[%c0_4, %c0_5] : memref<8x33xf32, #tpu.memory_space<vmem>>, vector<8x1xf32>
    tpu.vector_store %arg3[%c0_4, %c0_5], %0 {strides = array<i32>} : memref<8x33xf32, #tpu.memory_space<vmem>>, vector<8x1xf32>,
    %10 = math.sin %8 : vector<8x16xf32>
    %c0_6 = arith.constant 0 : index
    %c1 = arith.constant 1 : index
    %11 = vector.load %arg3[%c0_6, %c1] : memref<8x33xf32, #tpu.memory_space<vmem>>, vector<8x16xf32>
    tpu.vector_store %arg3[%c0_6, %c1], %10 {strides = array<i32>} : memref<8x33xf32, #tpu.memory_space<vmem>>, vector<8x16xf32>,
    %12 = math.cos %8 : vector<8x16xf32>
    %c0_7 = arith.constant 0 : index
    %c17 = arith.constant 17 : index
    %13 = vector.load %arg3[%c0_7, %c17] : memref<8x33xf32, #tpu.memory_space<vmem>>, vector<8x16xf32>
    tpu.vector_store %arg3[%c0_7, %c17], %12 {strides = array<i32>} : memref<8x33xf32, #tpu.memory_space<vmem>>, vector<8x16xf32>,
    return
  }
  func.func @transform_0(%arg0: i32) -> (i32, i32) {
    %c0_i32 = arith.constant 0 : i32
    %c0_i32_0 = arith.constant 0 : i32
    return %arg0, %c0_i32 : i32, i32
  }
  func.func @transform_1(%arg0: i32) -> (i32, i32) {
    %c0_i32 = arith.constant 0 : i32
    %c0_i32_0 = arith.constant 0 : i32
    %c0_i32_1 = arith.constant 0 : i32
    return %c0_i32, %c0_i32_0 : i32, i32
  }
  func.func @transform_2(%arg0: i32) -> (i32, i32) {
    %c0_i32 = arith.constant 0 : i32
    %c0_i32_0 = arith.constant 0 : i32
    return %arg0, %c0_i32 : i32, i32
  }
}

</mosaic_0001>

<llo_original>
// kernel: tpu_custom_call.1
$region0: #{tpu_custom_call.1}
  #allocation0 [shape = 'u32[]', space=smem, size = 0x4, offset = 0x4, fixed_abs, tag = 'smem constant byte address 0x4 - core index']
  #allocation1 [shape = 'u32[72,128]{1,0:T(1,128)}', space=vmem, size = 0x9000, scoped, tag = 'internal scratch']
  %s0 = inlined_call_operand.vmem [shape: f32[8,1], index: 0, kind: input, shape index: {}]
  %s1 = inlined_call_operand.vmem [shape: f32[1,16], index: 1, kind: input, shape index: {}]
  %s2 = inlined_call_operand.hbm [shape: f32[8,33], index: 2, kind: output, shape index: {}]
  %s3 = sld [smem:[#allocation0]]
  $region18: #{tpu_custom_call.1} parent=0
    _
  %s5 = ssub.s32 1, %s3
  %s6 = scalar_select 0, %s5, %s3
  $region1: #{tpu_custom_call.1} parent=0
    #allocation2 [shape = 'u8[4096]{0}', space=vmem, size = 0x1000, scoped, tag = 'output window, operand 0, single buffered']
    #allocation3 [shape = 's32[1]{0}', space=sflag, size = 0x4, scoped, tag = 'scoped memory for tpu_custom_call.1']
    %7 = vsyncpa [#allocation3], 0
    // Predicated region
    $region2: #{tpu_custom_call.1} parent=1 // pred_check
      _
    $region3: #{tpu_custom_call.1} parent=1 // pred_check_branch
      %9 = sbr.rel (0) target = $region5
    $region4: #{tpu_custom_call.1} parent=1 // pred_region
      _
    $region5: #{tpu_custom_call.1} parent=1 // pred_fallthru
      _
    // Predicated region
    $region6: #{tpu_custom_call.1} parent=1 // pred_check
      _
    $region7: #{tpu_custom_call.1} parent=1 // pred_check_branch
      %11 = sbr.rel (0) target = $region9
    $region8: #{tpu_custom_call.1} parent=1 // pred_region
      _
    $region9: #{tpu_custom_call.1} parent=1 // pred_fallthru
      _
    %v12 = vld [vmem:[%s0] sm:$0xff]
    %v13 = vld [vmem:[%s1] sm:$0x1]
    %15 = vset.pattern.permute.xlu0 0
    %16 = vperm.xlu0 %15, %v12
    %v17 = vpop.permute.xlu0 %16
    %v20 = vperm.slane %v13, 0
    %v22 = vmul.f32 %v17, %v20
    %v23 = vmul.f32 %v22, 2.0
    %v24 = vmul.f32 %v23, 3.1415927
    %vm25 = vcmask 7168
    %26 = vst.msk [vmem:[#allocation2] sm:$0xff] %vm25, %v12
    %v27 = vand.u32 2147483647, %v24
    %vm28 = vcmp.le.f32.partialorder %v27, 0.7853982
    %vm29 = vcmp.lt.s32.totalorder %v24, 0
    %v30 = vand.u32 %v24, 2139095040
    %v31 = vshrl.u32 %v30, 23
    %v32 = vsub.s32 %v31, 127
    %v33 = vand.u32 2147483647, %v24
    %v34 = vand.u32 %v33, 8388607
    %v35 = vor.u32 %v34, 8388608
    %v36 = vsub.s32 0, %v35
    %v37 = vadd.s32 %v32, 1
    %vm38 = vcmp.gt.s32.totalorder %v37, 0
    %v39 = vsel %vm38, %v37, 0
    %v40 = vshrl.u32 %v39, 5
    %v41 = vand.u32 %v39, 31
    %v42 = vsub.s32 32, %v41
    %v43 = vshrl.u32 683565275, %v42
    %v44 = vshll.u32 683565275, %v41
    %v45 = vshrl.u32 2475754826, %v42
    %v46 = vor.u32 %v44, %v45
    %v47 = vshll.u32 2475754826, %v41
    %v48 = vshrl.u32 2131351028, %v42
    %v49 = vor.u32 %v47, %v48
    %v50 = vshll.u32 2131351028, %v41
    %v51 = vshrl.u32 2102212464, %v42
    %v52 = vor.u32 %v50, %v51
    %v53 = vshll.u32 2102212464, %v41
    %v54 = vshrl.u32 920167782, %v42
    %v55 = vor.u32 %v53, %v54
    %v56 = vshll.u32 920167782, %v41
    %v57 = vshrl.u32 1326507024, %v42
    %v58 = vor.u32 %v56, %v57
    %vm59 = vcmp.lt.s32.totalorder %v40, 1
    %vm60 = vcmp.lt.s32.totalorder %v40, 2
    %vm61 = vcmp.lt.s32.totalorder %v40, 3
    %vm62 = vcmp.lt.s32.totalorder %v40, 4
    %v63 = vsel %vm59, %v43, %v46
    %v64 = vsel %vm62, %v52, 2102212464
    %v65 = vsel %vm61, %v49, %v64
    %v66 = vsel %vm60, %v63, %v65
    %v67 = vsel %vm59, %v46, %v49
    %v68 = vsel %vm62, %v55, 920167782
    %v69 = vsel %vm61, %v52, %v68
    %v70 = vsel %vm60, %v67, %v69
    %v71 = vsel %vm59, %v49, %v52
    %v72 = vsel %vm62, %v58, 1326507024
    %v73 = vsel %vm61, %v55, %v72
    %v74 = vsel %vm60, %v71, %v73
    %v75 = vshll.u32 %v35, 8
    %v76 = vand.u32 %v75, 65535
    %v77 = vshrl.u32 %v75, 16
    %v78 = vand.u32 %v74, 65535
    %v79 = vshrl.u32 %v74, 16
    %v80 = vmul.u32 %v76, %v78
    %v81 = vmul.u32 %v76, %v79
    %v82 = vmul.u32 %v77, %v78
    %v83 = vmul.u32 %v77, %v79
    %v84 = vshll.u32 %v81, 16
    %v85 = vshrl.u32 %v81, 16
    %v86 = vshll.u32 %v82, 16
    %v87 = vshrl.u32 %v82, 16
    %vm88 = vc.u32 %v80, %v84
    %v89 = vsel %vm88, 1, 0
    %v90 = vadd.s32 %v80, %v84
    %v91 = vadd.s32 %v83, %v89
    %vm92 = vc.u32 %v90, %v86
    %v93 = vsel %vm92, 1, 0
    %v94 = vadd.s32 %v90, %v86
    %v95 = vadd.s32 %v91, %v93
    %v96 = vadd.s32 %v95, %v85
    %v97 = vadd.s32 %v96, %v87
    %v98 = vand.u32 %v75, 65535
    %v99 = vshrl.u32 %v75, 16
    %v100 = vand.u32 %v70, 65535
    %v101 = vshrl.u32 %v70, 16
    %v102 = vmul.u32 %v98, %v100
    %v103 = vmul.u32 %v98, %v101
    %v104 = vmul.u32 %v99, %v100
    %v105 = vmul.u32 %v99, %v101
    %v106 = vshll.u32 %v103, 16
    %v107 = vshrl.u32 %v103, 16
    %v108 = vshll.u32 %v104, 16
    %v109 = vshrl.u32 %v104, 16
    %vm110 = vc.u32 %v102, %v106
    %v111 = vsel %vm110, 1, 0
    %v112 = vadd.s32 %v102, %v106
    %v113 = vadd.s32 %v105, %v111
    %vm114 = vc.u32 %v112, %v108
    %v115 = vsel %vm114, 1, 0
    %v116 = vadd.s32 %v112, %v108
    %v117 = vadd.s32 %v113, %v115
    %v118 = vadd.s32 %v117, %v107
    %v119 = vadd.s32 %v118, %v109
    %v120 = vmul.u32 %v75, %v66
    %v121 = vadd.s32 %v97, %v116
    %vm122 = vc.u32 %v97, %v116
    %v123 = vadd.s32 %v119, 1
    %v124 = vsel %vm122, %v123, %v119
    %v125 = vadd.s32 %v120, %v124
    %v126 = vadd.s32 %v125, 536870912
    %v127 = vshrl.u32 %v126, 30
    %v128 = vshll.u32 %v127, 30
    %v129 = vsub.s32 %v125, %v128
    %vm130 = vcmp.lt.s32.totalorder %v129, 0
    %v131 = vsub.s32 0, %v129
    %v132 = vsel %vm130, %v131, %v129
    %v133 = vclz %v132
    %v134 = vsub.s32 %v133, 2
    %vm135 = vcmp.gt.s32.totalorder 0, %v134
    %v136 = vsel %vm135, 0, %v134
    %v137 = vsub.s32 32, %v136
    %v138 = vshll.u32 %v129, %v136
    %v139 = vshrl.u32 %v121, %v137
    %v140 = vor.u32 %v138, %v139
    %v141 = vsub.s32 4294967266, %v136
    %v142 = vadd.s32 %v141, 127
    %v143 = vshll.u32 %v142, 23
    %v144 = vor.u32 4788187, %v143
    %v145 = vand.u32 2147483647, %v144
    %v147 = vcvt.s32.f32 %v140
    %v148 = vmul.f32 %v147, %v145
    %v149 = vxor.u32 %v148, 2147483648
    %v150 = vsel %vm29, %v149, %v148
    %v151 = vsub.s32 4, %v127
    %v152 = vsel %vm29, %v151, %v127
    %v153 = vsel %vm28, %v24, %v150
    %v154 = vsel %vm28, 0, %v152
    %v155 = vmul.f32 %v153, %v153
    %v156 = vmul.f32 %v155, -0.001358992
    %v157 = vadd.f32 %v156, 0.041655596
    %v158 = vmul.f32 %v155, %v157
    %v159 = vadd.f32 %v158, -0.4999988
    %v160 = vmul.f32 %v155, %v159
    %v161 = vadd.f32 1.0, %v160
    %v162 = vmul.f32 %v153, %v153
    %v163 = vmul.f32 %v162, -0.00019511016
    %v164 = vadd.f32 %v163, 0.008332121
    %v165 = vmul.f32 %v162, %v164
    %v166 = vadd.f32 %v165, -0.16666654
    %v167 = vmul.f32 %v162, %v166
    %v168 = vadd.f32 %v167, 1.0
    %v169 = vmul.f32 %v168, %v153
    %vm170 = vweird.f32 %v24
    %v171 = vadd.s32 %v154, 3
    %v172 = vand.u32 %v171, 3
    %vm173 = vcmp.lt.s32.totalorder %v172, 2
    %vm174 = vcmp.eq.s32.totalorder %v172, 0
    %v175 = vxor.u32 %v169, 2147483648
    %v176 = vsel %vm174, %v161, %v175
    %vm177 = vcmp.eq.s32.totalorder %v172, 2
    %v178 = vxor.u32 %v161, 2147483648
    %v179 = vsel %vm177, %v178, %v169
    %v180 = vsel %vm173, %v176, %v179
    %v181 = vsel %vm170, nan, %v180
    %183 = vrot.lane.b32.xlu0 %v181, 1
    %v184 = vpop.permute.xlu0 %183
    %vm186 = vcmask 138248
    %187 = vst.msk [vmem:[#allocation2] sm:$0xff] %vm186, %v184
    %v188 = vand.u32 2147483647, %v24
    %vm189 = vcmp.le.f32.partialorder %v188, 0.7853982
    %vm190 = vcmp.lt.s32.totalorder %v24, 0
    %v191 = vand.u32 %v24, 2139095040
    %v192 = vshrl.u32 %v191, 23
    %v193 = vsub.s32 %v192, 127
    %v194 = vand.u32 2147483647, %v24
    %v195 = vand.u32 %v194, 8388607
    %v196 = vor.u32 %v195, 8388608
    %v197 = vsub.s32 0, %v196
    %v198 = vadd.s32 %v193, 1
    %vm199 = vcmp.gt.s32.totalorder %v198, 0
    %v200 = vsel %vm199, %v198, 0
    %v201 = vshrl.u32 %v200, 5
    %v202 = vand.u32 %v200, 31
    %v203 = vsub.s32 32, %v202
    %v204 = vshrl.u32 683565275, %v203
    %v205 = vshll.u32 683565275, %v202
    %v206 = vshrl.u32 2475754826, %v203
    %v207 = vor.u32 %v205, %v206
    %v208 = vshll.u32 2475754826, %v202
    %v209 = vshrl.u32 2131351028, %v203
    %v210 = vor.u32 %v208, %v209
    %v211 = vshll.u32 2131351028, %v202
    %v212 = vshrl.u32 2102212464, %v203
    %v213 = vor.u32 %v211, %v212
    %v214 = vshll.u32 2102212464, %v202
    %v215 = vshrl.u32 920167782, %v203
    %v216 = vor.u32 %v214, %v215
    %v217 = vshll.u32 920167782, %v202
    %v218 = vshrl.u32 1326507024, %v203
    %v219 = vor.u32 %v217, %v218
    %vm220 = vcmp.lt.s32.totalorder %v201, 1
    %vm221 = vcmp.lt.s32.totalorder %v201, 2
    %vm222 = vcmp.lt.s32.totalorder %v201, 3
    %vm223 = vcmp.lt.s32.totalorder %v201, 4
    %v224 = vsel %vm220, %v204, %v207
    %v225 = vsel %vm223, %v213, 2102212464
    %v226 = vsel %vm222, %v210, %v225
    %v227 = vsel %vm221, %v224, %v226
    %v228 = vsel %vm220, %v207, %v210
    %v229 = vsel %vm223, %v216, 920167782
    %v230 = vsel %vm222, %v213, %v229
    %v231 = vsel %vm221, %v228, %v230
    %v232 = vsel %vm220, %v210, %v213
    %v233 = vsel %vm223, %v219, 1326507024
    %v234 = vsel %vm222, %v216, %v233
    %v235 = vsel %vm221, %v232, %v234
    %v236 = vshll.u32 %v196, 8
    %v237 = vand.u32 %v236, 65535
    %v238 = vshrl.u32 %v236, 16
    %v239 = vand.u32 %v235, 65535
    %v240 = vshrl.u32 %v235, 16
    %v241 = vmul.u32 %v237, %v239
    %v242 = vmul.u32 %v237, %v240
    %v243 = vmul.u32 %v238, %v239
    %v244 = vmul.u32 %v238, %v240
    %v245 = vshll.u32 %v242, 16
    %v246 = vshrl.u32 %v242, 16
    %v247 = vshll.u32 %v243, 16
    %v248 = vshrl.u32 %v243, 16
    %vm249 = vc.u32 %v241, %v245
    %v250 = vsel %vm249, 1, 0
    %v251 = vadd.s32 %v241, %v245
    %v252 = vadd.s32 %v244, %v250
    %vm253 = vc.u32 %v251, %v247
    %v254 = vsel %vm253, 1, 0
    %v255 = vadd.s32 %v251, %v247
    %v256 = vadd.s32 %v252, %v254
    %v257 = vadd.s32 %v256, %v246
    %v258 = vadd.s32 %v257, %v248
    %v259 = vand.u32 %v236, 65535
    %v260 = vshrl.u32 %v236, 16
    %v261 = vand.u32 %v231, 65535
    %v262 = vshrl.u32 %v231, 16
    %v263 = vmul.u32 %v259, %v261
    %v264 = vmul.u32 %v259, %v262
    %v265 = vmul.u32 %v260, %v261
    %v266 = vmul.u32 %v260, %v262
    %v267 = vshll.u32 %v264, 16
    %v268 = vshrl.u32 %v264, 16
    %v269 = vshll.u32 %v265, 16
    %v270 = vshrl.u32 %v265, 16
    %vm271 = vc.u32 %v263, %v267
    %v272 = vsel %vm271, 1, 0
    %v273 = vadd.s32 %v263, %v267
    %v274 = vadd.s32 %v266, %v272
    %vm275 = vc.u32 %v273, %v269
    %v276 = vsel %vm275, 1, 0
    %v277 = vadd.s32 %v273, %v269
    %v278 = vadd.s32 %v274, %v276
    %v279 = vadd.s32 %v278, %v268
    %v280 = vadd.s32 %v279, %v270
    %v281 = vmul.u32 %v236, %v227
    %v282 = vadd.s32 %v258, %v277
    %vm283 = vc.u32 %v258, %v277
    %v284 = vadd.s32 %v280, 1
    %v285 = vsel %vm283, %v284, %v280
    %v286 = vadd.s32 %v281, %v285
    %v287 = vadd.s32 %v286, 536870912
    %v288 = vshrl.u32 %v287, 30
    %v289 = vshll.u32 %v288, 30
    %v290 = vsub.s32 %v286, %v289
    %vm291 = vcmp.lt.s32.totalorder %v290, 0
    %v292 = vsub.s32 0, %v290
    %v293 = vsel %vm291, %v292, %v290
    %v294 = vclz %v293
    %v295 = vsub.s32 %v294, 2
    %vm296 = vcmp.gt.s32.totalorder 0, %v295
    %v297 = vsel %vm296, 0, %v295
    %v298 = vsub.s32 32, %v297
    %v299 = vshll.u32 %v290, %v297
    %v300 = vshrl.u32 %v282, %v298
    %v301 = vor.u32 %v299, %v300
    %v302 = vsub.s32 4294967266, %v297
    %v303 = vadd.s32 %v302, 127
    %v304 = vshll.u32 %v303, 23
    %v305 = vor.u32 4788187, %v304
    %v306 = vand.u32 2147483647, %v305
    %v308 = vcvt.s32.f32 %v301
    %v309 = vmul.f32 %v308, %v306
    %v310 = vxor.u32 %v309, 2147483648
    %v311 = vsel %vm190, %v310, %v309
    %v312 = vsub.s32 4, %v288
    %v313 = vsel %vm190, %v312, %v288
    %v314 = vsel %vm189, %v24, %v311
    %v315 = vsel %vm189, 0, %v313
    %v316 = vmul.f32 %v314, %v314
    %v317 = vmul.f32 %v316, -0.001358992
    %v318 = vadd.f32 %v317, 0.041655596
    %v319 = vmul.f32 %v316, %v318
    %v320 = vadd.f32 %v319, -0.4999988
    %v321 = vmul.f32 %v316, %v320
    %v322 = vadd.f32 1.0, %v321
    %v323 = vmul.f32 %v314, %v314
    %v324 = vmul.f32 %v323, -0.00019511016
    %v325 = vadd.f32 %v324, 0.008332121
    %v326 = vmul.f32 %v323, %v325
    %v327 = vadd.f32 %v326, -0.16666654
    %v328 = vmul.f32 %v323, %v327
    %v329 = vadd.f32 %v328, 1.0
    %v330 = vmul.f32 %v329, %v314
    %vm331 = vweird.f32 %v24
    %v332 = vand.u32 %v315, 3
    %vm333 = vcmp.lt.s32.totalorder %v332, 2
    %vm334 = vcmp.eq.s32.totalorder %v332, 0
    %v335 = vxor.u32 %v330, 2147483648
    %v336 = vsel %vm334, %v322, %v335
    %vm337 = vcmp.eq.s32.totalorder %v332, 2
    %v338 = vxor.u32 %v322, 2147483648
    %v339 = vsel %vm337, %v338, %v330
    %v340 = vsel %vm333, %v336, %v339
    %v341 = vsel %vm331, nan, %v340
    %343 = vrot.lane.b32.xlu0 %v341, 17
    %v344 = vpop.permute.xlu0 %343
    %vm346 = vcmask 269448
    %347 = vst.msk [vmem:[#allocation2] sm:$0xff] %vm346, %v344
    // Predicated region
    $region10: #{tpu_custom_call.1} parent=1 // pred_check
      _
    $region11: #{tpu_custom_call.1} parent=1 // pred_check_branch
      %349 = sbr.rel (0) target = $region13
    $region12: #{tpu_custom_call.1} parent=1 // pred_region
      %351 = vsyncadd [#allocation3], 0
      %s353 = sshll.u32 [#allocation2], 4
      %s354 = int_to_ptr.vmem [resolvable:$true] %s353
      %s355 = sshll.u32 %s2, 4
      %s356 = int_to_ptr.hbm [resolvable:$true] %s355
      %358 = dma.vmem_to_hbm [thread:$0]  %s354, 128, %s356, [#allocation3]
    $region13: #{tpu_custom_call.1} parent=1 // pred_fallthru
      _
    // Predicated region
    $region14: #{tpu_custom_call.1} parent=1 // pred_check
      _
    $region15: #{tpu_custom_call.1} parent=1 // pred_check_branch
      %360 = sbr.rel (0) target = $region17
    $region16: #{tpu_custom_call.1} parent=1 // pred_region
      %362 = dma.done [#allocation3], 128
    $region17: #{tpu_custom_call.1} parent=1 // pred_fallthru
      _
    %363 = vsyncpa [#allocation3], 1

</llo_original>
